<compile_context>
chip_gen: v7x
topology: tpu7x:2x2x1
jax: 0.10.0
libtpu: 0.0.40
codegen_flags: <defaults>
</compile_context>

<pallas_src>
import functools

import jax
import jax.numpy as jnp
from jax import lax
from jax.experimental import pallas as pl
from jax.experimental.pallas import tpu as pltpu


# ----------------------------- Pallas kernels ------------------------------ #

def _make_proj_kernel(n_in, n_out):
    """Generic fused projection kernel:  out_j = sum_i x_i @ W_ij + b_j.

    Ref order: x_0..x_{n_in-1}, W_00..W_{(n_in-1)(n_out-1)} (i-major), b_0..b_{n_out-1},
               then outputs o_0..o_{n_out-1}.
    """

    def kernel(*refs):
        w_off = n_in
        b_off = n_in + n_in * n_out
        o_off = b_off + n_out
        xs = [refs[i][...] for i in range(n_in)]
        for j in range(n_out):
            acc = refs[b_off + j][...]  # (1, Nj), broadcasts over rows
            for i in range(n_in):
                acc = acc + jnp.dot(
                    xs[i], refs[w_off + i * n_out + j][...],
                    preferred_element_type=jnp.float32)
            refs[o_off + j][...] = acc

    return kernel


def _bilstm_rec_kernel(gf_ref, gb_ref, whh_ref, of_ref, ob_ref, h_sc, c_sc, *,
                       hidden_dim):
    """Fused forward+backward LSTM recurrence over one T-chunk.

    gf_ref : (tc, B, 4H) precomputed fwd gates (x@W_ih_f + b_f), natural time order
    gb_ref : (tc, B, 4H) precomputed bwd gates for the MIRROR chunk (processed reversed)
    whh_ref: (2H, 8H)    block-diagonal recurrent weights [[Whh_f, 0], [0, Whh_b]]
    of_ref : (tc, B, H)  fwd hidden states for this chunk
    ob_ref : (tc, B, H)  bwd hidden states for the mirror chunk
    h_sc   : (B, 2H)     [h_fwd | h_bwd] persistent across grid steps
    c_sc   : (B, 2H)     [c_fwd | c_bwd] persistent across grid steps
    """
    H = hidden_dim
    tc = gf_ref.shape[0]

    @pl.when(pl.program_id(0) == 0)
    def _():
        h_sc[...] = jnp.zeros_like(h_sc)
        c_sc[...] = jnp.zeros_like(c_sc)

    def step(s, carry):
        # One 256-wide (for H=32; 8H in general) recurrent matmul for BOTH directions.
        rec = jnp.dot(h_sc[...], whh_ref[...],
                      preferred_element_type=jnp.float32)  # (B, 8H)
        gf = gf_ref[s] + rec[:, : 4 * H]             # (B, 4H) fwd gates at local time s
        gb = gb_ref[tc - 1 - s] + rec[:, 4 * H:]     # (B, 4H) bwd gates at mirrored time
        c = c_sc[...]

        # forward direction
        i_f = jax.nn.sigmoid(gf[:, 0:H])
        f_f = jax.nn.sigmoid(gf[:, H:2 * H])
        g_f = jnp.tanh(gf[:, 2 * H:3 * H])
        o_f = jax.nn.sigmoid(gf[:, 3 * H:4 * H])
        c_f = f_f * c[:, :H] + i_f * g_f
        h_f = o_f * jnp.tanh(c_f)

        # backward direction
        i_b = jax.nn.sigmoid(gb[:, 0:H])
        f_b = jax.nn.sigmoid(gb[:, H:2 * H])
        g_b = jnp.tanh(gb[:, 2 * H:3 * H])
        o_b = jax.nn.sigmoid(gb[:, 3 * H:4 * H])
        c_b = f_b * c[:, H:] + i_b * g_b
        h_b = o_b * jnp.tanh(c_b)

        h_sc[...] = jnp.concatenate([h_f, h_b], axis=1)
        c_sc[...] = jnp.concatenate([c_f, c_b], axis=1)
        of_ref[s] = h_f
        ob_ref[tc - 1 - s] = h_b
        return carry

    lax.fori_loop(0, tc, step, 0, unroll=min(tc, 8))


# ------------------------------ JAX wrappers -------------------------------- #

def _proj(xs, ws, bs, block_rows=512):
    """out_j = sum_i xs[i] @ ws[i][j] + bs[j], row-tiled over M, pipelined.

    xs[i]: (M, K_i)   ws[i][j]: (K_i, N_j)   bs[j]: (1, N_j)
    Returns a tuple of (M, N_j) float32 arrays.
    """
    M = xs[0].shape[0]
    n_in, n_out = len(xs), len(bs)
    out_cols = [b.shape[1] for b in bs]

    bm = M if M <= block_rows else block_rows
    grid = (pl.cdiv(M, bm),)

    in_specs = [pl.BlockSpec((bm, x.shape[1]), lambda m: (m, 0)) for x in xs]
    flat_ws = []
    for i in range(n_in):
        for j in range(n_out):
            w = ws[i][j]
            flat_ws.append(w)
            in_specs.append(pl.BlockSpec(w.shape, lambda m: (0, 0)))
    for b in bs:
        in_specs.append(pl.BlockSpec(b.shape, lambda m: (0, 0)))

    out_specs = [pl.BlockSpec((bm, n), lambda m: (m, 0)) for n in out_cols]
    out_shapes = [jax.ShapeDtypeStruct((M, n), jnp.float32) for n in out_cols]

    outs = pl.pallas_call(
        _make_proj_kernel(n_in, n_out),
        grid=grid,
        in_specs=in_specs,
        out_specs=out_specs,
        out_shape=out_shapes,
        compiler_params=pltpu.CompilerParams(
            dimension_semantics=("parallel",)),
    )(*xs, *flat_ws, *bs)
    return tuple(outs)


def _bilstm_recurrent(gates_f, gates_b, whh_cat, hidden_dim, max_chunk=128):
    """Run the fused bidirectional recurrence.

    gates_f, gates_b: (T, B, 4H) precomputed input gates per direction (natural time order)
    whh_cat:          (2H, 8H) block-diagonal recurrent weights
    Returns (out_fwd, out_bwd), each (T, B, H).
    """
    T, B, _ = gates_f.shape
    H = hidden_dim

    tc = min(T, max_chunk)
    while T % tc:
        tc -= 1
    n_chunks = T // tc

    def fwd_map(i):
        return (i, 0, 0)

    def bwd_map(i):
        return (n_chunks - 1 - i, 0, 0)

    out_f, out_b = pl.pallas_call(
        functools.partial(_bilstm_rec_kernel, hidden_dim=H),
        grid=(n_chunks,),
        in_specs=[
            pl.BlockSpec((tc, B, 4 * H), fwd_map),
            pl.BlockSpec((tc, B, 4 * H), bwd_map),
            pl.BlockSpec((2 * H, 8 * H), lambda i: (0, 0)),
        ],
        out_specs=[
            pl.BlockSpec((tc, B, H), fwd_map),
            pl.BlockSpec((tc, B, H), bwd_map),
        ],
        out_shape=[
            jax.ShapeDtypeStruct((T, B, H), jnp.float32),
            jax.ShapeDtypeStruct((T, B, H), jnp.float32),
        ],
        scratch_shapes=[
            pltpu.VMEM((B, 2 * H), jnp.float32),   # [h_fwd | h_bwd]
            pltpu.VMEM((B, 2 * H), jnp.float32),   # [c_fwd | c_bwd]
        ],
        compiler_params=pltpu.CompilerParams(
            dimension_semantics=("arbitrary",)),
    )(gates_f, gates_b, whh_cat)
    return out_f, out_b


def device_bilstm_encoder(params, x):
    """x: (B, T, input_dim) -> (B, T, output_dim). Matches PyTorch module in eval mode."""
    B, T, _ = x.shape
    p0, p1 = params["layer0"], params["layer1"]
    H = p0["whh_cat"].shape[0] // 2
    out_dim = params["fc_w_t"].shape[1]

    # time-major flatten: row index = t * B + b
    x2d = jnp.transpose(x, (1, 0, 2)).reshape(T * B, -1)

    # ---- layer 0: hoisted input projection for both directions (one matmul each) ----
    gf0, gb0 = _proj(
        [x2d],
        [[p0["wih_f_t"], p0["wih_b_t"]]],
        [p0["b_f"], p0["b_b"]])
    hf0, hb0 = _bilstm_recurrent(
        gf0.reshape(T, B, 4 * H), gb0.reshape(T, B, 4 * H), p0["whh_cat"], H)
    # TODO(synk): nn.LSTM inter-layer dropout (train-only) intentionally omitted (eval mode).

    # ---- layer 1: [fwd|bwd] concat folded into a two-operand projection ----
    hf0_2d = hf0.reshape(T * B, H)
    hb0_2d = hb0.reshape(T * B, H)
    gf1, gb1 = _proj(
        [hf0_2d, hb0_2d],
        [[p1["wih_f_t"][:H], p1["wih_b_t"][:H]],
         [p1["wih_f_t"][H:], p1["wih_b_t"][H:]]],
        [p1["b_f"], p1["b_b"]])
    hf1, hb1 = _bilstm_recurrent(
        gf1.reshape(T, B, 4 * H), gb1.reshape(T, B, 4 * H), p1["whh_cat"], H)

    # ---- FC: concat again folded into a two-operand matmul ----
    (y2d,) = _proj(
        [hf1.reshape(T * B, H), hb1.reshape(T * B, H)],
        [[params["fc_w_t"][:H]], [params["fc_w_t"][H:]]],
        [params["fc_b"]])
    return jnp.transpose(y2d.reshape(T, B, out_dim), (1, 0, 2))


# --------------------------- parameter construction ------------------------- #

def init_params(key, input_dim, hidden_dim, output_dim):
    """Deterministic init mimicking PyTorch's uniform(-1/sqrt(H), 1/sqrt(H))."""
    H = hidden_dim
    k = 1.0 / jnp.sqrt(jnp.float32(H))

    def u(key, shape):
        return jax.random.uniform(key, shape, jnp.float32, -k, k)

    params = {}
    keys = jax.random.split(key, 2 * 2 * 4 + 2)
    ki = 0
    for layer in range(2):
        d_in = input_dim if layer == 0 else 2 * H
        raw = []
        for _direction in range(2):
            w_ih = u(keys[ki], (4 * H, d_in)); ki += 1
            w_hh = u(keys[ki], (4 * H, H));    ki += 1
            b_ih = u(keys[ki], (4 * H,));      ki += 1
            b_hh = u(keys[ki], (4 * H,));      ki += 1
            raw.append((w_ih, w_hh, b_ih, b_hh))
        (wih_f, whh_f, bih_f, bhh_f), (wih_b, whh_b, bih_b, bhh_b) = raw

        # Block-diagonal recurrent weights: [h_f | h_b] @ whh_cat = [gates_f | gates_b]
        whh_cat = jnp.zeros((2 * H, 8 * H), jnp.float32)
        whh_cat = whh_cat.at[:H, :4 * H].set(jnp.transpose(whh_f))
        whh_cat = whh_cat.at[H:, 4 * H:].set(jnp.transpose(whh_b))

        params[f"layer{layer}"] = {
            "wih_f_t": jnp.transpose(wih_f),              # (d_in, 4H)
            "wih_b_t": jnp.transpose(wih_b),              # (d_in, 4H)
            "b_f": (bih_f + bhh_f).reshape(1, 4 * H),
            "b_b": (bih_b + bhh_b).reshape(1, 4 * H),
            "whh_cat": whh_cat,                           # (2H, 8H)
        }

    fc_w = u(keys[ki], (output_dim, 2 * H)); ki += 1
    fc_b = u(keys[ki], (output_dim,));       ki += 1
    params["fc_w_t"] = jnp.transpose(fc_w)                # (2H, output_dim)
    params["fc_b"] = fc_b.reshape(1, output_dim)
    return params


# ----------------------------------- main ----------------------------------- #

if __name__ == "__main__":
    B, T = 2, 8
    input_dim, hidden_dim, output_dim = 6, 32, 64

    root = jax.random.PRNGKey(0)
    k_params, k_x = jax.random.split(root)
    params = init_params(k_params, input_dim, hidden_dim, output_dim)
    x = jax.random.normal(k_x, (B, T, input_dim), jnp.float32)

    y = device_bilstm_encoder(params, x)
    y = jax.block_until_ready(y)
    assert y.shape == (B, T, output_dim), y.shape
    assert bool(jnp.all(jnp.isfinite(y)))
    print("KERNEL_OK")
</pallas_src>

<mosaic_0001>
module attributes {stable_mosaic.version = 11 : i64} {
  func.func @kernel(%arg0: i32, %arg1: memref<16x6xf32, #tpu.memory_space<vmem>>, %arg2: memref<6x128xf32, #tpu.memory_space<vmem>>, %arg3: memref<6x128xf32, #tpu.memory_space<vmem>>, %arg4: memref<1x128xf32, #tpu.memory_space<vmem>>, %arg5: memref<1x128xf32, #tpu.memory_space<vmem>>, %arg6: memref<16x128xf32, #tpu.memory_space<vmem>>, %arg7: memref<16x128xf32, #tpu.memory_space<vmem>>) attributes {dimension_semantics = [#tpu.dimension_semantics<parallel>], iteration_bounds = array<i64: 1>, scalar_prefetch = 0 : i64, scratch_operands = 0 : i64, tpu.core_type = #tpu.core_type<tc>, window_params = [{transform_indices = @transform_0, window_bounds = array<i64: 16, 6>}, {pipeline_mode = #tpu.pipeline_mode<synchronous>, transform_indices = @transform_1, window_bounds = array<i64: 6, 128>}, {pipeline_mode = #tpu.pipeline_mode<synchronous>, transform_indices = @transform_2, window_bounds = array<i64: 6, 128>}, {pipeline_mode = #tpu.pipeline_mode<synchronous>, transform_indices = @transform_3, window_bounds = array<i64: 1, 128>}, {pipeline_mode = #tpu.pipeline_mode<synchronous>, transform_indices = @transform_4, window_bounds = array<i64: 1, 128>}, {transform_indices = @transform_5, window_bounds = array<i64: 16, 128>}, {transform_indices = @transform_6, window_bounds = array<i64: 16, 128>}]} {
    %c0 = arith.constant 0 : index
    %c0_0 = arith.constant 0 : index
    %0 = vector.load %arg1[%c0, %c0_0] : memref<16x6xf32, #tpu.memory_space<vmem>>, vector<16x6xf32>
    %c0_1 = arith.constant 0 : index
    %c0_2 = arith.constant 0 : index
    %1 = vector.load %arg4[%c0_1, %c0_2] : memref<1x128xf32, #tpu.memory_space<vmem>>, vector<1x128xf32>
    %c0_3 = arith.constant 0 : index
    %c0_4 = arith.constant 0 : index
    %2 = vector.load %arg2[%c0_3, %c0_4] : memref<6x128xf32, #tpu.memory_space<vmem>>, vector<6x128xf32>
    %cst = arith.constant dense<0.000000e+00> : vector<16x128xf32>
    %3 = tpu.matmul %0, %2, %cst {dimension_numbers = #tpu.dot_dimension_numbers<[1], [0], [0], [1], [0, 0, 1, 1], [], []>} : vector<16x6xf32>, vector<6x128xf32>, vector<16x128xf32> -> vector<16x128xf32>
    %4 = vector.broadcast %1 : vector<1x128xf32> to vector<16x128xf32>
    %5 = arith.addf %4, %3 : vector<16x128xf32>
    %c0_5 = arith.constant 0 : index
    %c0_6 = arith.constant 0 : index
    %6 = vector.load %arg6[%c0_5, %c0_6] : memref<16x128xf32, #tpu.memory_space<vmem>>, vector<16x128xf32>
    tpu.vector_store %arg6[%c0_5, %c0_6], %5 {strides = array<i32>} : memref<16x128xf32, #tpu.memory_space<vmem>>, vector<16x128xf32>,
    %c0_7 = arith.constant 0 : index
    %c0_8 = arith.constant 0 : index
    %7 = vector.load %arg5[%c0_7, %c0_8] : memref<1x128xf32, #tpu.memory_space<vmem>>, vector<1x128xf32>
    %c0_9 = arith.constant 0 : index
    %c0_10 = arith.constant 0 : index
    %8 = vector.load %arg3[%c0_9, %c0_10] : memref<6x128xf32, #tpu.memory_space<vmem>>, vector<6x128xf32>
    %cst_11 = arith.constant dense<0.000000e+00> : vector<16x128xf32>
    %9 = tpu.matmul %0, %8, %cst_11 {dimension_numbers = #tpu.dot_dimension_numbers<[1], [0], [0], [1], [0, 0, 1, 1], [], []>} : vector<16x6xf32>, vector<6x128xf32>, vector<16x128xf32> -> vector<16x128xf32>
    %10 = vector.broadcast %7 : vector<1x128xf32> to vector<16x128xf32>
    %11 = arith.addf %10, %9 : vector<16x128xf32>
    %c0_12 = arith.constant 0 : index
    %c0_13 = arith.constant 0 : index
    %12 = vector.load %arg7[%c0_12, %c0_13] : memref<16x128xf32, #tpu.memory_space<vmem>>, vector<16x128xf32>
    tpu.vector_store %arg7[%c0_12, %c0_13], %11 {strides = array<i32>} : memref<16x128xf32, #tpu.memory_space<vmem>>, vector<16x128xf32>,
    return
  }
  func.func @transform_0(%arg0: i32) -> (i32, i32) {
    %c0_i32 = arith.constant 0 : i32
    %c0_i32_0 = arith.constant 0 : i32
    return %arg0, %c0_i32 : i32, i32
  }
  func.func @transform_1(%arg0: i32) -> (i32, i32) {
    %c0_i32 = arith.constant 0 : i32
    %c0_i32_0 = arith.constant 0 : i32
    %c0_i32_1 = arith.constant 0 : i32
    return %c0_i32, %c0_i32_0 : i32, i32
  }
  func.func @transform_2(%arg0: i32) -> (i32, i32) {
    %c0_i32 = arith.constant 0 : i32
    %c0_i32_0 = arith.constant 0 : i32
    %c0_i32_1 = arith.constant 0 : i32
    return %c0_i32, %c0_i32_0 : i32, i32
  }
  func.func @transform_3(%arg0: i32) -> (i32, i32) {
    %c0_i32 = arith.constant 0 : i32
    %c0_i32_0 = arith.constant 0 : i32
    %c0_i32_1 = arith.constant 0 : i32
    return %c0_i32, %c0_i32_0 : i32, i32
  }
  func.func @transform_4(%arg0: i32) -> (i32, i32) {
    %c0_i32 = arith.constant 0 : i32
    %c0_i32_0 = arith.constant 0 : i32
    %c0_i32_1 = arith.constant 0 : i32
    return %c0_i32, %c0_i32_0 : i32, i32
  }
  func.func @transform_5(%arg0: i32) -> (i32, i32) {
    %c0_i32 = arith.constant 0 : i32
    %c0_i32_0 = arith.constant 0 : i32
    return %arg0, %c0_i32 : i32, i32
  }
  func.func @transform_6(%arg0: i32) -> (i32, i32) {
    %c0_i32 = arith.constant 0 : i32
    %c0_i32_0 = arith.constant 0 : i32
    return %arg0, %c0_i32 : i32, i32
  }
}

</mosaic_0001>

<llo_original>
// kernel: tpu_custom_call.1
$region0: #{tpu_custom_call.1}
  #allocation0 [shape = 'u32[]', space=smem, size = 0x4, offset = 0x4, fixed_abs, tag = 'smem constant byte address 0x4 - core index']
  #allocation1 [shape = 'u32[144,128]{1,0:T(1,128)}', space=vmem, size = 0x12000, scoped, tag = 'internal scratch']
  %s0 = inlined_call_operand.vmem [shape: f32[16,6], index: 0, kind: input, shape index: {}]
  %s1 = inlined_call_operand.vmem [shape: f32[6,128], index: 1, kind: input, shape index: {}]
  %s2 = inlined_call_operand.vmem [shape: f32[6,128], index: 2, kind: input, shape index: {}]
  %s3 = inlined_call_operand.vmem [shape: f32[1,128], index: 3, kind: input, shape index: {}]
  %s4 = inlined_call_operand.vmem [shape: f32[1,128], index: 4, kind: input, shape index: {}]
  %s5 = inlined_call_operand.hbm [shape: f32[16,128], index: 5, kind: output, shape index: {0}]
  %s6 = inlined_call_operand.hbm [shape: f32[16,128], index: 6, kind: output, shape index: {1}]
  %7 = xla_tuple %s5, %s6
  %s8 = sld [smem:[#allocation0]]
  $region38: #{tpu_custom_call.1} parent=0
    _
  %s10 = ssub.s32 1, %s8
  %s11 = scalar_select 0, %s10, %s8
  $region1: #{tpu_custom_call.1} parent=0
    #allocation2 [shape = 'u8[8192]{0}', space=vmem, size = 0x2000, scoped, tag = 'output window, operand 0, single buffered']
    #allocation3 [shape = 's32[1]{0}', space=sflag, size = 0x4, scoped, tag = 'scoped memory for tpu_custom_call.1']
    #allocation4 [shape = 'u8[8192]{0}', space=vmem, size = 0x2000, scoped, tag = 'output window, operand 1, single buffered']
    #allocation5 [shape = 's32[1]{0}', space=sflag, size = 0x4, scoped, tag = 'scoped memory for tpu_custom_call.1']
    %12 = vsyncpa [#allocation3], 0
    %13 = vsyncpa [#allocation5], 0
    // Predicated region
    $region2: #{tpu_custom_call.1} parent=1 // pred_check
      _
    $region3: #{tpu_custom_call.1} parent=1 // pred_check_branch
      %15 = sbr.rel (0) target = $region5
    $region4: #{tpu_custom_call.1} parent=1 // pred_region
      _
    $region5: #{tpu_custom_call.1} parent=1 // pred_fallthru
      _
    // Predicated region
    $region6: #{tpu_custom_call.1} parent=1 // pred_check
      _
    $region7: #{tpu_custom_call.1} parent=1 // pred_check_branch
      %17 = sbr.rel (0) target = $region9
    $region8: #{tpu_custom_call.1} parent=1 // pred_region
      _
    $region9: #{tpu_custom_call.1} parent=1 // pred_fallthru
      _
    // Predicated region
    $region10: #{tpu_custom_call.1} parent=1 // pred_check
      _
    $region11: #{tpu_custom_call.1} parent=1 // pred_check_branch
      %19 = sbr.rel (0) target = $region13
    $region12: #{tpu_custom_call.1} parent=1 // pred_region
      _
    $region13: #{tpu_custom_call.1} parent=1 // pred_fallthru
      _
    // Predicated region
    $region14: #{tpu_custom_call.1} parent=1 // pred_check
      _
    $region15: #{tpu_custom_call.1} parent=1 // pred_check_branch
      %21 = sbr.rel (0) target = $region17
    $region16: #{tpu_custom_call.1} parent=1 // pred_region
      _
    $region17: #{tpu_custom_call.1} parent=1 // pred_fallthru
      _
    // Predicated region
    $region18: #{tpu_custom_call.1} parent=1 // pred_check
      _
    $region19: #{tpu_custom_call.1} parent=1 // pred_check_branch
      %23 = sbr.rel (0) target = $region21
    $region20: #{tpu_custom_call.1} parent=1 // pred_region
      _
    $region21: #{tpu_custom_call.1} parent=1 // pred_fallthru
      _
    %v24 = vld [vmem:[%s0] sm:$0xff]
    %v25 = vld [vmem:[%s0 + $0x8] sm:$0xff]
    %v26 = vld [vmem:[%s3] sm:$0x1]
    %v27 = vld [vmem:[%s1] sm:$0x3f]
    %vm28 = vcmask 48128
    %v30 = vsel %vm28, %v24, 0
    %v33 = vsel %vm28, %v25, 0
    %vm35 = vcmask 1045504
    %v37 = vsel %vm35, %v27, 0
    %39 = vmatprep.subr.mxu0 0.0
    %40 = vmatpush1.msra.mxu0 %v37
    %41 = vmatprep.subr.mxu0 0.0
    %42 = vmatpush1.msra.mxu0 0.0
    %43 = vmatprep.subr.mxu0 0.0
    %44 = vmatpush1.msra.mxu0 0.0
    %45 = vmatprep.subr.mxu0 0.0
    %46 = vmatpush1.msra.mxu0 0.0
    %47 = vmatprep.subr.mxu0 0.0
    %48 = vmatpush1.msra.mxu0 0.0
    %49 = vmatprep.subr.mxu0 0.0
    %50 = vmatpush1.msra.mxu0 0.0
    %51 = vmatprep.subr.mxu0 0.0
    %52 = vmatpush1.msra.mxu0 0.0
    %53 = vmatprep.subr.mxu0 0.0
    %54 = vmatpush1.msra.mxu0 0.0
    %55 = vmatprep.subr.mxu0 0.0
    %56 = vmatpush1.msra.mxu0 0.0
    %57 = vmatprep.subr.mxu0 0.0
    %58 = vmatpush1.msra.mxu0 0.0
    %59 = vmatprep.subr.mxu0 0.0
    %60 = vmatpush1.msra.mxu0 0.0
    %61 = vmatprep.subr.mxu0 0.0
    %62 = vmatpush1.msra.mxu0 0.0
    %63 = vmatprep.subr.mxu0 0.0
    %64 = vmatpush1.msra.mxu0 0.0
    %65 = vmatprep.subr.mxu0 0.0
    %66 = vmatpush1.msra.mxu0 0.0
    %67 = vmatprep.subr.mxu0 0.0
    %68 = vmatpush1.msra.mxu0 0.0
    %69 = vmatprep.subr.mxu0 0.0
    %70 = vmatpush1.msra.mxu0 0.0
    %71 = vmatprep.subr.mxu0 0.0
    %72 = vmatpush1.msra.mxu0 0.0
    %73 = vmatprep.subr.mxu0 0.0
    %74 = vmatpush1.msra.mxu0 0.0
    %75 = vmatprep.subr.mxu0 0.0
    %76 = vmatpush1.msra.mxu0 0.0
    %77 = vmatprep.subr.mxu0 0.0
    %78 = vmatpush1.msra.mxu0 0.0
    %79 = vmatprep.subr.mxu0 0.0
    %80 = vmatpush1.msra.mxu0 0.0
    %81 = vmatprep.subr.mxu0 0.0
    %82 = vmatpush1.msra.mxu0 0.0
    %83 = vmatprep.subr.mxu0 0.0
    %84 = vmatpush1.msra.mxu0 0.0
    %85 = vmatprep.subr.mxu0 0.0
    %86 = vmatpush1.msra.mxu0 0.0
    %87 = vmatprep.subr.mxu0 0.0
    %88 = vmatpush1.msra.mxu0 0.0
    %89 = vmatprep.subr.mxu0 0.0
    %90 = vmatpush1.msra.mxu0 0.0
    %91 = vmatprep.subr.mxu0 0.0
    %92 = vmatpush1.msra.mxu0 0.0
    %93 = vmatprep.subr.mxu0 0.0
    %94 = vmatpush1.msra.mxu0 0.0
    %95 = vmatprep.subr.mxu0 0.0
    %96 = vmatpush1.msra.mxu0 0.0
    %97 = vmatprep.subr.mxu0 0.0
    %98 = vmatpush1.msra.mxu0 0.0
    %99 = vmatprep.subr.mxu0 0.0
    %100 = vmatpush1.msra.mxu0 0.0
    %101 = vmatprep.subr.mxu0 0.0
    %102 = vmatpush1.msra.mxu0 0.0
    %103 = vmatprep.mubr.f32.mxu0 0.0
    %104 = vmatmul.mubr.f32.gmra.mrb[0].mxu0 %v30
    %v105 = vpop.f32.mrb[0].mxu0
    %v106 = vadd.f32 0.0, %v105
    %v107 = vpop.f32.mrb[0].mxu0
    %108 = vmatprep.mubr.f32.mxu0 0.0
    %109 = vmatmul.mubr.f32.gmra.mrb[0].mxu0 %v33
    %v110 = vpop.f32.mrb[0].mxu0
    %v111 = vadd.f32 0.0, %v110
    %v112 = vpop.f32.mrb[0].mxu0
    %113 = vdwg.mxu0
    %v115 = vlaneseq
    %v116 = vshrl.u32 %v115, 7
    %v117 = vsub.s32 0, %v116
    %v118 = vrot.slane %v26, %v117
    %v120 = vadd.f32 %v118, %v106
    %v121 = vadd.f32 %v118, %v111
    %122 = vst [vmem:[#allocation2] sm:$0xff] %v120
    %123 = vst [vmem:[#allocation2 + $0x8] sm:$0xff] %v121
    %v124 = vld [vmem:[%s4] sm:$0x1]
    %v125 = vld [vmem:[%s2] sm:$0x3f]
    %v127 = vsel %vm35, %v125, 0
    %129 = vmatprep.subr.mxu0 0.0
    %130 = vmatpush1.msra.mxu0 %v127
    %131 = vmatprep.subr.mxu0 0.0
    %132 = vmatpush1.msra.mxu0 0.0
    %133 = vmatprep.subr.mxu0 0.0
    %134 = vmatpush1.msra.mxu0 0.0
    %135 = vmatprep.subr.mxu0 0.0
    %136 = vmatpush1.msra.mxu0 0.0
    %137 = vmatprep.subr.mxu0 0.0
    %138 = vmatpush1.msra.mxu0 0.0
    %139 = vmatprep.subr.mxu0 0.0
    %140 = vmatpush1.msra.mxu0 0.0
    %141 = vmatprep.subr.mxu0 0.0
    %142 = vmatpush1.msra.mxu0 0.0
    %143 = vmatprep.subr.mxu0 0.0
    %144 = vmatpush1.msra.mxu0 0.0
    %145 = vmatprep.subr.mxu0 0.0
    %146 = vmatpush1.msra.mxu0 0.0
    %147 = vmatprep.subr.mxu0 0.0
    %148 = vmatpush1.msra.mxu0 0.0
    %149 = vmatprep.subr.mxu0 0.0
    %150 = vmatpush1.msra.mxu0 0.0
    %151 = vmatprep.subr.mxu0 0.0
    %152 = vmatpush1.msra.mxu0 0.0
    %153 = vmatprep.subr.mxu0 0.0
    %154 = vmatpush1.msra.mxu0 0.0
    %155 = vmatprep.subr.mxu0 0.0
    %156 = vmatpush1.msra.mxu0 0.0
    %157 = vmatprep.subr.mxu0 0.0
    %158 = vmatpush1.msra.mxu0 0.0
    %159 = vmatprep.subr.mxu0 0.0
    %160 = vmatpush1.msra.mxu0 0.0
    %161 = vmatprep.subr.mxu0 0.0
    %162 = vmatpush1.msra.mxu0 0.0
    %163 = vmatprep.subr.mxu0 0.0
    %164 = vmatpush1.msra.mxu0 0.0
    %165 = vmatprep.subr.mxu0 0.0
    %166 = vmatpush1.msra.mxu0 0.0
    %167 = vmatprep.subr.mxu0 0.0
    %168 = vmatpush1.msra.mxu0 0.0
    %169 = vmatprep.subr.mxu0 0.0
    %170 = vmatpush1.msra.mxu0 0.0
    %171 = vmatprep.subr.mxu0 0.0
    %172 = vmatpush1.msra.mxu0 0.0
    %173 = vmatprep.subr.mxu0 0.0
    %174 = vmatpush1.msra.mxu0 0.0
    %175 = vmatprep.subr.mxu0 0.0
    %176 = vmatpush1.msra.mxu0 0.0
    %177 = vmatprep.subr.mxu0 0.0
    %178 = vmatpush1.msra.mxu0 0.0
    %179 = vmatprep.subr.mxu0 0.0
    %180 = vmatpush1.msra.mxu0 0.0
    %181 = vmatprep.subr.mxu0 0.0
    %182 = vmatpush1.msra.mxu0 0.0
    %183 = vmatprep.subr.mxu0 0.0
    %184 = vmatpush1.msra.mxu0 0.0
    %185 = vmatprep.subr.mxu0 0.0
    %186 = vmatpush1.msra.mxu0 0.0
    %187 = vmatprep.subr.mxu0 0.0
    %188 = vmatpush1.msra.mxu0 0.0
    %189 = vmatprep.subr.mxu0 0.0
    %190 = vmatpush1.msra.mxu0 0.0
    %191 = vmatprep.subr.mxu0 0.0
    %192 = vmatpush1.msra.mxu0 0.0
    %193 = vmatprep.mubr.f32.mxu0 0.0
    %194 = vmatmul.mubr.f32.gmra.mrb[0].mxu0 %v30
    %v195 = vpop.f32.mrb[0].mxu0
    %v196 = vadd.f32 0.0, %v195
    %v197 = vpop.f32.mrb[0].mxu0
    %198 = vmatprep.mubr.f32.mxu0 0.0
    %199 = vmatmul.mubr.f32.gmra.mrb[0].mxu0 %v33
    %v200 = vpop.f32.mrb[0].mxu0
    %v201 = vadd.f32 0.0, %v200
    %v202 = vpop.f32.mrb[0].mxu0
    %203 = vdwg.mxu0
    %v205 = vlaneseq
    %v206 = vshrl.u32 %v205, 7
    %v207 = vsub.s32 0, %v206
    %v208 = vrot.slane %v124, %v207
    %v210 = vadd.f32 %v208, %v196
    %v211 = vadd.f32 %v208, %v201
    %212 = vst [vmem:[#allocation4] sm:$0xff] %v210
    %213 = vst [vmem:[#allocation4 + $0x8] sm:$0xff] %v211
    // Predicated region
    $region22: #{tpu_custom_call.1} parent=1 // pred_check
      _
    $region23: #{tpu_custom_call.1} parent=1 // pred_check_branch
      %215 = sbr.rel (0) target = $region25
    $region24: #{tpu_custom_call.1} parent=1 // pred_region
      %s217 = ssub.s32 256, 256
      %218 = vsyncadd [#allocation3], %s217
      %s219 = sshll.u32 [#allocation2], 4
      %s220 = int_to_ptr.vmem [resolvable:$true] %s219
      %225 = dma.vmem_to_hbm [thread:$0]  %s220, 256, %s5, [#allocation3], 128, 128, 8
    $region25: #{tpu_custom_call.1} parent=1 // pred_fallthru
      _
    // Predicated region
    $region26: #{tpu_custom_call.1} parent=1 // pred_check
      _
    $region27: #{tpu_custom_call.1} parent=1 // pred_check_branch
      %227 = sbr.rel (0) target = $region29
    $region28: #{tpu_custom_call.1} parent=1 // pred_region
      %s229 = ssub.s32 256, 256
      %230 = vsyncadd [#allocation5], %s229
      %s231 = sshll.u32 [#allocation4], 4
      %s232 = int_to_ptr.vmem [resolvable:$true] %s231
      %237 = dma.vmem_to_hbm [thread:$0]  %s232, 256, %s6, [#allocation5], 128, 128, 8
    $region29: #{tpu_custom_call.1} parent=1 // pred_fallthru
      _
    // Predicated region
    $region30: #{tpu_custom_call.1} parent=1 // pred_check
      _
    $region31: #{tpu_custom_call.1} parent=1 // pred_check_branch
      %239 = sbr.rel (0) target = $region33
    $region32: #{tpu_custom_call.1} parent=1 // pred_region
      %240 = dma.done [#allocation3], 256
    $region33: #{tpu_custom_call.1} parent=1 // pred_fallthru
      _
    // Predicated region
    $region34: #{tpu_custom_call.1} parent=1 // pred_check
      _
    $region35: #{tpu_custom_call.1} parent=1 // pred_check_branch
      %242 = sbr.rel (0) target = $region37
    $region36: #{tpu_custom_call.1} parent=1 // pred_region
      %243 = dma.done [#allocation5], 256
    $region37: #{tpu_custom_call.1} parent=1 // pred_fallthru
      _
    %244 = vsyncpa [#allocation3], 1
    %245 = vsyncpa [#allocation5], 1

</llo_original>
